<compile_context>
chip_gen: v6e
topology: v6e:2x2x1
jax: 0.10.0
libtpu: 0.0.40
codegen_flags: <defaults>
</compile_context>

<pallas_src>
import functools
import math

import jax
import jax.numpy as jnp
from jax.experimental import pallas as pl
from jax.experimental.pallas import tpu as pltpu

LN_EPS = 1e-5            # nn.LayerNorm default
GELU_APPROX = True
SOFTMAX_APPROX_RECIP = True


def _round_up(a, b):
    return (a + b - 1) // b * b


def _layernorm(x, g, b):
    mu = jnp.mean(x, axis=-1, keepdims=True)
    var = jnp.mean((x - mu) ** 2, axis=-1, keepdims=True)
    return (x - mu) * jax.lax.rsqrt(var + LN_EPS) * g + b


def _vmem_cap_bytes():
    """Per-core VMEM capacity with headroom (v7x 64MiB vs v5e/v6e 128MiB)."""
    try:
        info = pltpu.get_tpu_info()
        cap = getattr(info, "vmem_capacity_bytes", None)
        if cap:
            return int(cap * 0.85)
    except Exception:
        pass
    return 48 << 20   # conservative fallback that fits 64 MiB (v7x) parts


def _blocks_vmem_estimate(bb, N, C, hidden, num_heads):
    """Rough per-step VMEM use incl. in-kernel temporaries + double-buffered weights."""
    tok = bb * N
    w = (4 * C * C + 2 * C * hidden) * 2 * 2          # bf16 weights, double-buffered
    small = (6 * C + hidden) * 4 * 2                  # packed LN/bias params
    io = tok * C * (2 + 4) * 2                        # bf16 in + f32 out, double-buffered
    act = tok * C * 4                                 # resident activation scratch
    tmp = (tok * 3 * C * 6                            # qkv f32 + bf16 copies
           + 2 * num_heads * N * N * 4                # scores + probs (one image live)
           + tok * hidden * 6                         # mlp hidden f32 + bf16
           + 4 * tok * C * 4)                         # xn / attn / mlp / residual temps
    return w + small + io + act + tmp


def _pick_bb(B, N, C, hidden, num_heads, vmem_cap):
    """Largest batch tile (divisor of B) that fits VMEM; target >=1024 tokens/step."""
    bb = 1
    for cand in range(1, B + 1):
        if cand > 8:                                   # bound the static attention unroll
            break
        if B % cand:
            continue
        if _blocks_vmem_estimate(cand, N, C, hidden, num_heads) * 1.6 > vmem_cap:
            break
        bb = cand
        if cand * N >= 1024:                           # enough tokens per weight fetch
            break
    return bb


# ----------------------------- Pallas kernels --------------------------------

def patch_embed_kernel(x_ref, w_ref, p_ref, o_ref):
    # Fused patch-embed linear + LayerNorm epilogue (one HBM round trip).
    # x:(tm,Kp) bf16, w:(Kp,C) bf16, p:(3,C) f32 [bias, gamma, beta] -> o:(tm,C) bf16
    y = jnp.dot(x_ref[...], w_ref[...], preferred_element_type=jnp.float32)
    prm = p_ref[...]
    y = y + prm[0:1]
    o_ref[...] = _layernorm(y, prm[1:2], prm[2:3]).astype(o_ref.dtype)


def encoder_blocks_kernel(x_ref, small_ref, b1_ref, wqkv_ref, wo_ref,
                          w1_ref, w2_ref, fn_ref, o_ref, act_ref, *, num_heads):
    """All transformer blocks for one batch tile of bb images.

    grid = (B//bb, depth); the (bb*N, C) activation lives in `act_ref` (VMEM) across
    the depth axis, per-layer weights are streamed via their (l, ...) index_map, and
    the final encoder LayerNorm is fused into the last layer's epilogue.
    """
    l = pl.program_id(1)
    bb, n, c = x_ref.shape
    tok = bb * n
    hd = c // num_heads
    bf16 = jnp.bfloat16

    @pl.when(l == 0)
    def _():
        act_ref[...] = x_ref[...].reshape(tok, c).astype(jnp.float32)

    x = act_ref[...]                                   # (tok, C) f32, resident
    sm = small_ref[0]                                  # (6, C) f32 packed params
    ln1g, ln1b = sm[0:1], sm[1:2]
    ln2g, ln2b = sm[2:3], sm[3:4]
    bo, b2 = sm[4:5], sm[5:6]

    # ---- self-attention branch: batch-folded matmuls, per-image attention ----
    xn = _layernorm(x, ln1g, ln1b).astype(bf16)
    # qkv_bias=False; 1/sqrt(head_dim) already folded into the q columns of wqkv.
    qkv = jnp.dot(xn, wqkv_ref[0], preferred_element_type=jnp.float32)   # (tok, 3C)

    ctx_parts = []
    for ib in range(bb):                               # static unroll (bb is small)
        rows = slice(ib * n, (ib + 1) * n)
        q = qkv[rows, :c].astype(bf16).reshape(n, num_heads, hd)
        k = qkv[rows, c:2 * c].astype(bf16).reshape(n, num_heads, hd)
        v = qkv[rows, 2 * c:].astype(bf16).reshape(n, num_heads, hd)
        s = jnp.einsum('qhd,khd->hqk', q, k,
                       preferred_element_type=jnp.float32)              # (H, N, N)
        s = s - jnp.max(s, axis=-1, keepdims=True)
        pr = jnp.exp(s)
        denom = jnp.sum(pr, axis=-1, keepdims=True)
        if SOFTMAX_APPROX_RECIP:
            pr = pr * pl.reciprocal(denom, approx=True)
        else:
            pr = pr / denom
        ctx = jnp.einsum('hqk,khd->qhd', pr.astype(bf16), v,
                         preferred_element_type=jnp.float32)             # (N, H, hd)
        ctx_parts.append(ctx.reshape(n, c))
    ctx_all = (ctx_parts[0] if bb == 1
               else jnp.concatenate(ctx_parts, axis=0)).astype(bf16)     # (tok, C)

    attn = jnp.dot(ctx_all, wo_ref[0], preferred_element_type=jnp.float32) + bo
    x = x + attn

    # ---- MLP branch ----
    xn2 = _layernorm(x, ln2g, ln2b).astype(bf16)
    h = jnp.dot(xn2, w1_ref[0], preferred_element_type=jnp.float32) + b1_ref[0]
    h = jax.nn.gelu(h, approximate=GELU_APPROX).astype(bf16)
    mlp = jnp.dot(h, w2_ref[0], preferred_element_type=jnp.float32) + b2
    x = x + mlp

    act_ref[...] = x

    @pl.when(l == pl.num_programs(1) - 1)
    def _():
        # fused final encoder LayerNorm epilogue; lane-dense (C multiple of 128)
        fn = fn_ref[...]
        o_ref[...] = _layernorm(act_ref[...], fn[0:1], fn[1:2]).reshape(bb, n, c)


# ----------------------------- wrappers ---------------------------------------

def patch_embed_forward(x_nchw, pe_w, pe_b, ln_g, ln_b, patch):
    """Conv2d(kernel=stride=patch) as patch-major matmul + fused LayerNorm (bf16 out)."""
    B, Cin, H, W = x_nchw.shape
    Hp, Wp = H // patch, W // patch
    xr = x_nchw.reshape(B, Cin, Hp, patch, Wp, patch)
    xr = jnp.transpose(xr, (0, 2, 4, 1, 3, 5)).reshape(B * Hp * Wp,
                                                       Cin * patch * patch)
    w = pe_w.reshape(pe_w.shape[0], -1).T              # (Cin*P*P, C), matches (ci,p,q)
    M, K = xr.shape
    C = w.shape[1]

    # zero-pad K to a lane multiple (dense MXU contraction, no masked sub-lane loads)
    Kp = _round_up(max(K, 128), 128)
    if Kp != K:
        xr = jnp.pad(xr, ((0, 0), (0, Kp - K)))
        w = jnp.pad(w, ((0, Kp - K), (0, 0)))

    # robust row tiling: pad M instead of requiring divisibility; big pipelined tiles
    tm = 512 if M > 512 else _round_up(M, 8)
    Mp = _round_up(M, tm)
    if Mp != M:
        xr = jnp.pad(xr, ((0, Mp - M), (0, 0)))
    grid_m = Mp // tm

    prm = jnp.concatenate([pe_b.reshape(1, C), ln_g.reshape(1, C),
                           ln_b.reshape(1, C)], axis=0)          # (3, C)

    est = (2 * tm * Kp * 2 + 2 * Kp * C * 2 + 2 * tm * C * 2
           + 2 * tm * C * 4 + 3 * C * 4)
    vmem_limit = min(_vmem_cap_bytes(), max(8 << 20, 2 * est))

    y = pl.pallas_call(
        patch_embed_kernel,
        grid=(grid_m,),
        in_specs=[pl.BlockSpec((tm, Kp), lambda i: (i, 0)),
                  pl.BlockSpec((Kp, C), lambda i: (0, 0)),
                  pl.BlockSpec((3, C), lambda i: (0, 0))],
        out_specs=pl.BlockSpec((tm, C), lambda i: (i, 0)),
        out_shape=jax.ShapeDtypeStruct((Mp, C), jnp.bfloat16),
        compiler_params=pltpu.CompilerParams(
            dimension_semantics=("parallel",),
            vmem_limit_bytes=vmem_limit),
    )(xr.astype(jnp.bfloat16), w.astype(jnp.bfloat16), prm)
    return y[:M].reshape(B, Hp * Wp, C), Hp, Wp


def encoder_blocks(x_bf16, p, *, num_heads):
    """All depth blocks + final LayerNorm in one pallas_call, grid=(B//bb, depth)."""
    B, N, C = x_bf16.shape
    depth = p['wqkv'].shape[0]
    hidden = p['w1'].shape[2]
    bf16 = jnp.bfloat16

    vmem_cap = _vmem_cap_bytes()
    # batch tile: amortize each per-layer weight fetch over bb*N tokens
    # (note: on v7x this may leave the parallel axis at extent 1; duplicating weight
    #  streams across both cores would not help a weight-BW-bound kernel anyway)
    bb = _pick_bb(B, N, C, hidden, num_heads, vmem_cap)
    est = _blocks_vmem_estimate(bb, N, C, hidden, num_heads)
    vmem_limit = min(vmem_cap, max(16 << 20, int(est * 1.5) + (2 << 20)))

    # fold 1/sqrt(head_dim) into the q columns of wqkv (trace time, zero kernel cost)
    scale = 1.0 / math.sqrt(C // num_heads)
    wqkv = p['wqkv'].at[:, :, :C].multiply(scale).astype(bf16)

    # pack the small per-layer (1, C) params into one streamed array:
    # rows = ln1_g, ln1_b, ln2_g, ln2_b, attn-proj bias, mlp fc2 bias
    small = jnp.concatenate([p['ln1_g'], p['ln1_b'], p['ln2_g'], p['ln2_b'],
                             p['bo'], p['b2']], axis=1)           # (depth, 6, C)
    fn = jnp.concatenate([p['norm_g'], p['norm_b']], axis=0)      # (2, C)

    def per_layer(shape):
        return pl.BlockSpec(shape, lambda b, l: (l, 0, 0))

    in_specs = [
        pl.BlockSpec((bb, N, C), lambda b, l: (b, 0, 0)),   # x (resident across l)
        per_layer((1, 6, C)),                               # packed LN/bias params
        per_layer((1, 1, hidden)),                          # mlp fc1 bias
        per_layer((1, C, 3 * C)),                           # qkv weight (scale folded)
        per_layer((1, C, C)),                               # attn out-proj weight
        per_layer((1, C, hidden)),                          # mlp fc1 weight
        per_layer((1, hidden, C)),                          # mlp fc2 weight
        pl.BlockSpec((2, C), lambda b, l: (0, 0)),          # final norm gamma/beta
    ]

    kern = functools.partial(encoder_blocks_kernel, num_heads=num_heads)
    return pl.pallas_call(
        kern,
        grid=(B // bb, depth),
        in_specs=in_specs,
        out_specs=pl.BlockSpec((bb, N, C), lambda b, l: (b, 0, 0)),
        out_shape=jax.ShapeDtypeStruct((B, N, C), jnp.float32),
        scratch_shapes=[pltpu.VMEM((bb * N, C), jnp.float32)],
        compiler_params=pltpu.CompilerParams(
            dimension_semantics=("parallel", "arbitrary"),
            vmem_limit_bytes=vmem_limit),
    )(x_bf16, small, p['b1'],
      wqkv, p['wo'].astype(bf16), p['w1'].astype(bf16), p['w2'].astype(bf16),
      fn)


def encoder_forward(x_nchw, params, *, patch, num_heads):
    # x, H, W = self.patch_embed(x)
    x, H, W = patch_embed_forward(x_nchw, params['pe_w'], params['pe_b'],
                                  params['pe_ln_g'], params['pe_ln_b'], patch)
    # has_cls_token=False (default) -> no cls token / pre_embed concat
    x = encoder_blocks(x, params, num_heads=num_heads)   # blocks + final norm fused
    return x, H, W


# ----------------------------- parameter init ---------------------------------

def init_params(key, embed_dim, depth, mlp_ratio, in_chans, patch):
    hidden = embed_dim * mlp_ratio
    std = 0.02                                   # trunc_normal_ std
    ks = jax.random.split(key, 5)

    # Conv2d init: normal(0, sqrt(2/fan_out)), fan_out = kH*kW*out_ch
    fan_out = patch * patch * embed_dim
    pe_w = jax.random.normal(ks[0], (embed_dim, in_chans, patch, patch),
                             dtype=jnp.float32) * math.sqrt(2.0 / fan_out)

    C, Hd = embed_dim, hidden
    return dict(
        pe_w=pe_w,
        pe_b=jnp.zeros((C,), jnp.float32),
        pe_ln_g=jnp.ones((1, C), jnp.float32),
        pe_ln_b=jnp.zeros((1, C), jnp.float32),
        norm_g=jnp.ones((1, C), jnp.float32),
        norm_b=jnp.zeros((1, C), jnp.float32),
        # per-layer params stacked along a leading depth axis (streamed by grid)
        ln1_g=jnp.ones((depth, 1, C), jnp.float32),
        ln1_b=jnp.zeros((depth, 1, C), jnp.float32),
        wqkv=jax.random.normal(ks[1], (depth, C, 3 * C), jnp.float32) * std,
        wo=jax.random.normal(ks[2], (depth, C, C), jnp.float32) * std,
        bo=jnp.zeros((depth, 1, C), jnp.float32),
        ln2_g=jnp.ones((depth, 1, C), jnp.float32),
        ln2_b=jnp.zeros((depth, 1, C), jnp.float32),
        w1=jax.random.normal(ks[3], (depth, C, Hd), jnp.float32) * std,
        b1=jnp.zeros((depth, 1, Hd), jnp.float32),
        w2=jax.random.normal(ks[4], (depth, Hd, C), jnp.float32) * std,
        b2=jnp.zeros((depth, 1, C), jnp.float32),
    )


# ----------------------------- main --------------------------------------------

if __name__ == "__main__":
    B, Cin, H, W = 2, 3, 16, 16
    patch = 4
    embed_dim = 128          # lane-dense C (multiple of 128)
    depth = 2
    sa_num_heads = 8
    mlp_ratio = 4

    key = jax.random.PRNGKey(0)
    k_inp, k_par = jax.random.split(key)
    x = jax.random.normal(k_inp, (B, Cin, H, W), dtype=jnp.float32)
    params = init_params(k_par, embed_dim, depth, mlp_ratio, Cin, patch)

    out, Hp, Wp = encoder_forward(x, params, patch=patch, num_heads=sa_num_heads)
    out = jax.block_until_ready(out)

    assert out.shape == (B, (H // patch) * (W // patch), embed_dim)
    assert (Hp, Wp) == (H // patch, W // patch)
    print("KERNEL_OK")
</pallas_src>

<mosaic_0001>
module attributes {stable_mosaic.version = 11 : i64} {
  func.func @patch_embed_kernel(%arg0: i32, %arg1: memref<32x128xbf16, #tpu.memory_space<vmem>>, %arg2: memref<128x128xbf16, #tpu.memory_space<vmem>>, %arg3: memref<3x128xf32, #tpu.memory_space<vmem>>, %arg4: memref<32x128xbf16, #tpu.memory_space<vmem>>) attributes {dimension_semantics = [#tpu.dimension_semantics<parallel>], iteration_bounds = array<i64: 1>, scalar_prefetch = 0 : i64, scratch_operands = 0 : i64, tpu.core_type = #tpu.core_type<tc>, window_params = [{transform_indices = @transform_0, window_bounds = array<i64: 32, 128>}, {pipeline_mode = #tpu.pipeline_mode<synchronous>, transform_indices = @transform_1, window_bounds = array<i64: 128, 128>}, {pipeline_mode = #tpu.pipeline_mode<synchronous>, transform_indices = @transform_2, window_bounds = array<i64: 3, 128>}, {transform_indices = @transform_3, window_bounds = array<i64: 32, 128>}]} {
    %c0 = arith.constant 0 : index
    %c0_0 = arith.constant 0 : index
    %0 = vector.load %arg1[%c0, %c0_0] : memref<32x128xbf16, #tpu.memory_space<vmem>>, vector<32x128xbf16>
    %c0_1 = arith.constant 0 : index
    %c0_2 = arith.constant 0 : index
    %1 = vector.load %arg2[%c0_1, %c0_2] : memref<128x128xbf16, #tpu.memory_space<vmem>>, vector<128x128xbf16>
    %cst = arith.constant dense<0.000000e+00> : vector<32x128xf32>
    %2 = tpu.matmul %0, %1, %cst {dimension_numbers = #tpu.dot_dimension_numbers<[1], [0], [0], [1], [0, 0, 1, 1], [], []>} : vector<32x128xbf16>, vector<128x128xbf16>, vector<32x128xf32> -> vector<32x128xf32>
    %c0_3 = arith.constant 0 : index
    %c0_4 = arith.constant 0 : index
    %3 = vector.load %arg3[%c0_3, %c0_4] : memref<3x128xf32, #tpu.memory_space<vmem>>, vector<3x128xf32>
    %4 = vector.extract_strided_slice %3 {offsets = [0, 0], sizes = [1, 128], strides = [1, 1]} : vector<3x128xf32> to vector<1x128xf32>
    %5 = vector.broadcast %4 : vector<1x128xf32> to vector<32x128xf32>
    %6 = arith.addf %2, %5 : vector<32x128xf32>
    %7 = vector.extract_strided_slice %3 {offsets = [1, 0], sizes = [1, 128], strides = [1, 1]} : vector<3x128xf32> to vector<1x128xf32>
    %8 = vector.extract_strided_slice %3 {offsets = [2, 0], sizes = [1, 128], strides = [1, 1]} : vector<3x128xf32> to vector<1x128xf32>
    %cst_5 = arith.constant dense<0.000000e+00> : vector<32xf32>
    %9 = vector.multi_reduction <add>, %6, %cst_5 [1] : vector<32x128xf32> to vector<32xf32>
    %10 = vector.shape_cast %9 : vector<32xf32> to vector<32x1xf32>
    %cst_6 = arith.constant 1.280000e+02 : f32
    %11 = vector.broadcast %cst_6 : f32 to vector<32x1xf32>
    %12 = arith.divf %10, %11 : vector<32x1xf32>
    %13 = vector.broadcast %12 : vector<32x1xf32> to vector<32x128xf32>
    %14 = arith.subf %6, %13 : vector<32x128xf32>
    %15 = arith.mulf %14, %14 : vector<32x128xf32>
    %cst_7 = arith.constant dense<0.000000e+00> : vector<32xf32>
    %16 = vector.multi_reduction <add>, %15, %cst_7 [1] : vector<32x128xf32> to vector<32xf32>
    %17 = vector.shape_cast %16 : vector<32xf32> to vector<32x1xf32>
    %cst_8 = arith.constant 1.280000e+02 : f32
    %18 = vector.broadcast %cst_8 : f32 to vector<32x1xf32>
    %19 = arith.divf %17, %18 : vector<32x1xf32>
    %20 = vector.broadcast %12 : vector<32x1xf32> to vector<32x128xf32>
    %21 = arith.subf %6, %20 : vector<32x128xf32>
    %cst_9 = arith.constant 9.99999974E-6 : f32
    %22 = vector.broadcast %cst_9 : f32 to vector<32x1xf32>
    %23 = arith.addf %19, %22 : vector<32x1xf32>
    %24 = math.rsqrt %23 : vector<32x1xf32>
    %25 = vector.broadcast %24 : vector<32x1xf32> to vector<32x128xf32>
    %26 = arith.mulf %21, %25 : vector<32x128xf32>
    %27 = vector.broadcast %7 : vector<1x128xf32> to vector<32x128xf32>
    %28 = arith.mulf %26, %27 : vector<32x128xf32>
    %29 = vector.broadcast %8 : vector<1x128xf32> to vector<32x128xf32>
    %30 = arith.addf %28, %29 : vector<32x128xf32>
    %31 = arith.truncf %30 : vector<32x128xf32> to vector<32x128xbf16>
    %c0_10 = arith.constant 0 : index
    %c0_11 = arith.constant 0 : index
    %32 = vector.load %arg4[%c0_10, %c0_11] : memref<32x128xbf16, #tpu.memory_space<vmem>>, vector<32x128xbf16>
    tpu.vector_store %arg4[%c0_10, %c0_11], %31 {strides = array<i32>} : memref<32x128xbf16, #tpu.memory_space<vmem>>, vector<32x128xbf16>,
    return
  }
  func.func @transform_0(%arg0: i32) -> (i32, i32) {
    %c0_i32 = arith.constant 0 : i32
    %c0_i32_0 = arith.constant 0 : i32
    return %arg0, %c0_i32 : i32, i32
  }
  func.func @transform_1(%arg0: i32) -> (i32, i32) {
    %c0_i32 = arith.constant 0 : i32
    %c0_i32_0 = arith.constant 0 : i32
    %c0_i32_1 = arith.constant 0 : i32
    return %c0_i32, %c0_i32_0 : i32, i32
  }
  func.func @transform_2(%arg0: i32) -> (i32, i32) {
    %c0_i32 = arith.constant 0 : i32
    %c0_i32_0 = arith.constant 0 : i32
    %c0_i32_1 = arith.constant 0 : i32
    return %c0_i32, %c0_i32_0 : i32, i32
  }
  func.func @transform_3(%arg0: i32) -> (i32, i32) {
    %c0_i32 = arith.constant 0 : i32
    %c0_i32_0 = arith.constant 0 : i32
    return %arg0, %c0_i32 : i32, i32
  }
}

</mosaic_0001>

<llo_original>
// kernel: tpu_custom_call.1
$region0: #{tpu_custom_call.1}
  #allocation0 [shape = 'u32[]', space=smem, size = 0x4, offset = 0x4, fixed_abs, tag = 'smem constant byte address 0x4 - core index']
  #allocation1 [shape = 'u32[144,128]{1,0:T(1,128)}', space=vmem, size = 0x12000, scoped, tag = 'internal scratch']
  %s0 = inlined_call_operand.hbm [shape: bf16[32,128], index: 0, kind: input, shape index: {}]
  %s1 = inlined_call_operand.hbm [shape: bf16[128,128], index: 1, kind: input, shape index: {}]
  %s2 = inlined_call_operand.hbm [shape: f32[3,128], index: 2, kind: input, shape index: {}]
  %s3 = inlined_call_operand.hbm [shape: bf16[32,128], index: 3, kind: output, shape index: {}]
  %s4 = sld [smem:[#allocation0]]
  $region34: #{tpu_custom_call.1} parent=0
    _
  %s6 = ssub.s32 1, %s4
  %s7 = scalar_select 0, %s6, %s4
  $region1: #{tpu_custom_call.1} parent=0
    #allocation2 [shape = 'u8[8192]{0}', space=vmem, size = 0x2000, scoped, tag = 'input window, operand 0, single buffered']
    #allocation3 [shape = 's32[1]{0}', space=sflag, size = 0x4, scoped, tag = 'scoped memory for tpu_custom_call.1']
    #allocation4 [shape = 's32[1]{0}', space=sflag, size = 0x4, scoped, tag = 'scoped memory for tpu_custom_call.1']
    #allocation5 [shape = 'u8[32768]{0}', space=vmem, size = 0x8000, scoped, tag = 'input window, operand 1, single buffered']
    #allocation6 [shape = 's32[1]{0}', space=sflag, size = 0x4, scoped, tag = 'scoped memory for tpu_custom_call.1']
    #allocation7 [shape = 'u8[2048]{0}', space=vmem, size = 0x800, scoped, tag = 'input window, operand 2, single buffered']
    #allocation8 [shape = 'u8[8192]{0}', space=vmem, size = 0x2000, scoped, tag = 'output window, operand 0, single buffered']
    %8 = vsyncpa [#allocation3], 0
    %9 = vsyncpa [#allocation6], 0
    %10 = vsyncpa [#allocation4], 0
    // Predicated region
    $region2: #{tpu_custom_call.1} parent=1 // pred_check
      _
    $region3: #{tpu_custom_call.1} parent=1 // pred_check_branch
      %12 = sbr.rel (0) target = $region5
    $region4: #{tpu_custom_call.1} parent=1 // pred_region
      %s14 = ssub.s32 256, 256
      %15 = vsyncadd [#allocation3], %s14
      %s16 = sshll.u32 [#allocation2], 4
      %s17 = int_to_ptr.vmem [resolvable:$true] %s16
      %22 = dma.hbm_to_vmem [thread:$0]  %s0, 256, %s17, [#allocation3], 64, 64, 4
    $region5: #{tpu_custom_call.1} parent=1 // pred_fallthru
      _
    // Predicated region
    $region6: #{tpu_custom_call.1} parent=1 // pred_check
      _
    $region7: #{tpu_custom_call.1} parent=1 // pred_check_branch
      %24 = sbr.rel (0) target = $region9
    $region8: #{tpu_custom_call.1} parent=1 // pred_region
      %s26 = ssub.s32 1024, 1024
      %27 = vsyncadd [#allocation6], %s26
      %s28 = sshll.u32 [#allocation5], 4
      %s29 = int_to_ptr.vmem [resolvable:$true] %s28
      %34 = dma.hbm_to_vmem [thread:$0]  %s1, 1024, %s29, [#allocation6], 64, 64, 4
    $region9: #{tpu_custom_call.1} parent=1 // pred_fallthru
      _
    // Predicated region
    $region10: #{tpu_custom_call.1} parent=1 // pred_check
      _
    $region11: #{tpu_custom_call.1} parent=1 // pred_check_branch
      %36 = sbr.rel (0) target = $region13
    $region12: #{tpu_custom_call.1} parent=1 // pred_region
      %s38 = ssub.s32 64, 64
      %39 = vsyncadd [#allocation6], %s38
      %s41 = sshll.u32 [#allocation7], 4
      %s42 = int_to_ptr.vmem [resolvable:$true] %s41
      %44 = dma.hbm_to_vmem [thread:$0]  %s2, 64, %s42, [#allocation6]
    $region13: #{tpu_custom_call.1} parent=1 // pred_fallthru
      _
    // Predicated region
    $region14: #{tpu_custom_call.1} parent=1 // pred_check
      _
    $region15: #{tpu_custom_call.1} parent=1 // pred_check_branch
      %46 = sbr.rel (0) target = $region17
    $region16: #{tpu_custom_call.1} parent=1 // pred_region
      %47 = dma.done [#allocation3], 256
    $region17: #{tpu_custom_call.1} parent=1 // pred_fallthru
      _
    // Predicated region
    $region18: #{tpu_custom_call.1} parent=1 // pred_check
      _
    $region19: #{tpu_custom_call.1} parent=1 // pred_check_branch
      %49 = sbr.rel (0) target = $region21
    $region20: #{tpu_custom_call.1} parent=1 // pred_region
      %50 = dma.done [#allocation6], 1024
    $region21: #{tpu_custom_call.1} parent=1 // pred_fallthru
      _
    // Predicated region
    $region22: #{tpu_custom_call.1} parent=1 // pred_check
      _
    $region23: #{tpu_custom_call.1} parent=1 // pred_check_branch
      %52 = sbr.rel (0) target = $region25
    $region24: #{tpu_custom_call.1} parent=1 // pred_region
      %53 = dma.done [#allocation6], 64
    $region25: #{tpu_custom_call.1} parent=1 // pred_fallthru
      _
    %v55 = vld [vmem:[#allocation2] sm:$0xf]
    %v56 = vld [vmem:[#allocation2 + $0x4] sm:$0xf]
    %v57 = vld [vmem:[#allocation2 + $0x8] sm:$0xf]
    %v58 = vld [vmem:[#allocation2 + $0xc] sm:$0xf]
    %v59 = vld [vmem:[#allocation5] sm:$0xf]
    %v60 = vld [vmem:[#allocation5 + $0x4] sm:$0xf]
    %v61 = vld [vmem:[#allocation5 + $0x8] sm:$0xf]
    %v62 = vld [vmem:[#allocation5 + $0xc] sm:$0xf]
    %v63 = vld [vmem:[#allocation5 + $0x10] sm:$0xf]
    %v64 = vld [vmem:[#allocation5 + $0x14] sm:$0xf]
    %v65 = vld [vmem:[#allocation5 + $0x18] sm:$0xf]
    %v66 = vld [vmem:[#allocation5 + $0x1c] sm:$0xf]
    %v67 = vld [vmem:[#allocation5 + $0x20] sm:$0xf]
    %v68 = vld [vmem:[#allocation5 + $0x24] sm:$0xf]
    %v69 = vld [vmem:[#allocation5 + $0x28] sm:$0xf]
    %v70 = vld [vmem:[#allocation5 + $0x2c] sm:$0xf]
    %v71 = vld [vmem:[#allocation5 + $0x30] sm:$0xf]
    %v72 = vld [vmem:[#allocation5 + $0x34] sm:$0xf]
    %v73 = vld [vmem:[#allocation5 + $0x38] sm:$0xf]
    %v74 = vld [vmem:[#allocation5 + $0x3c] sm:$0xf]
    %v75 = vld [vmem:[#allocation7] sm:$0x7]
    %v76 = vlaneseq
    %v77 = vshrl.u32 %v76, 7
    %v78 = vsub.s32 0, %v77
    %v79 = vrot.slane %v75, %v78
    %v84 = vunpack.c.l.b16 %v55
    %v85 = vunpack.c.l.b16 %v56
    %v86 = vunpack.c.l.b16 %v57
    %v87 = vunpack.c.l.b16 %v58
    %v88 = vpack.c.b16 %v85, %v84
    %v89 = vpack.c.b16 %v87, %v86
    %v108 = vunpack.c.l.b16 %v59
    %v109 = vunpack.c.l.b16 %v60
    %v110 = vunpack.c.l.b16 %v61
    %v111 = vunpack.c.l.b16 %v62
    %v112 = vunpack.c.l.b16 %v63
    %v113 = vunpack.c.l.b16 %v64
    %v114 = vunpack.c.l.b16 %v65
    %v115 = vunpack.c.l.b16 %v66
    %v116 = vunpack.c.l.b16 %v67
    %v117 = vunpack.c.l.b16 %v68
    %v118 = vunpack.c.l.b16 %v69
    %v119 = vunpack.c.l.b16 %v70
    %v120 = vunpack.c.l.b16 %v71
    %v121 = vunpack.c.l.b16 %v72
    %v122 = vunpack.c.l.b16 %v73
    %v123 = vunpack.c.l.b16 %v74
    %v124 = vpack.c.b16 %v109, %v108
    %v125 = vpack.c.b16 %v111, %v110
    %v126 = vpack.c.b16 %v113, %v112
    %v127 = vpack.c.b16 %v115, %v114
    %v128 = vpack.c.b16 %v117, %v116
    %v129 = vpack.c.b16 %v119, %v118
    %v130 = vpack.c.b16 %v121, %v120
    %v131 = vpack.c.b16 %v123, %v122
    %140 = vmatprep.subr.bf16.mxu0 0
    %141 = vmatpush1.bf16.msra.mxu0 %v131
    %142 = vmatprep.subr.bf16.mxu0 0
    %143 = vmatpush1.bf16.msra.mxu0 %v130
    %144 = vmatprep.subr.bf16.mxu0 0
    %145 = vmatpush1.bf16.msra.mxu0 %v129
    %146 = vmatprep.subr.bf16.mxu0 0
    %147 = vmatpush1.bf16.msra.mxu0 %v128
    %148 = vmatprep.subr.bf16.mxu0 0
    %149 = vmatpush1.bf16.msra.mxu0 %v127
    %150 = vmatprep.subr.bf16.mxu0 0
    %151 = vmatpush1.bf16.msra.mxu0 %v126
    %152 = vmatprep.subr.bf16.mxu0 0
    %153 = vmatpush1.bf16.msra.mxu0 %v125
    %154 = vmatprep.subr.bf16.mxu0 0
    %155 = vmatpush1.bf16.msra.mxu0 %v124
    %156 = vmatprep.subr.bf16.mxu0 0
    %157 = vmatpush2.bf16.msra.mxu0 0
    %158 = vmatprep.subr.bf16.mxu0 0
    %159 = vmatpush2.bf16.msra.mxu0 0
    %160 = vmatprep.subr.bf16.mxu0 0
    %161 = vmatpush2.bf16.msra.mxu0 0
    %162 = vmatprep.subr.bf16.mxu0 0
    %163 = vmatpush2.bf16.msra.mxu0 0
    %164 = vmatprep.subr.bf16.mxu0 0
    %165 = vmatpush2.bf16.msra.mxu0 0
    %166 = vmatprep.subr.bf16.mxu0 0
    %167 = vmatpush2.bf16.msra.mxu0 0
    %168 = vmatprep.subr.bf16.mxu0 0
    %169 = vmatpush2.bf16.msra.mxu0 0
    %170 = vmatprep.subr.bf16.mxu0 0
    %171 = vmatpush2.bf16.msra.mxu0 0
    %172 = vmatprep.mubr.bf16.mxu0 0
    %173 = vmatmul.mubr.bf16.gmra.mxu0 %v88
    %v174 = vpop.f32.mrf.mxu0
    %v175 = vadd.f32 %v79, %v174
    %v176 = vpop.f32.mrf.mxu0
    %v177 = vpop.f32.mrf.mxu0
    %v178 = vadd.f32 %v79, %v177
    %v179 = vpop.f32.mrf.mxu0
    %180 = vmatprep.mubr.bf16.mxu0 0
    %181 = vmatmul.mubr.bf16.gmra.mxu0 %v89
    %v182 = vpop.f32.mrf.mxu0
    %v183 = vadd.f32 %v79, %v182
    %v184 = vpop.f32.mrf.mxu0
    %v185 = vpop.f32.mrf.mxu0
    %v186 = vadd.f32 %v79, %v185
    %v187 = vpop.f32.mrf.mxu0
    %188 = vdwg.mxu0
    %189 = vadd.xlane.f32.xlu0 %v175
    %v190 = vpop.xlane.xlu0 %189
    %191 = vadd.xlane.f32.xlu0 %v178
    %v192 = vpop.xlane.xlu0 %191
    %193 = vadd.xlane.f32.xlu0 %v183
    %v194 = vpop.xlane.xlu0 %193
    %195 = vadd.xlane.f32.xlu0 %v186
    %v196 = vpop.xlane.xlu0 %195
    %v197 = vrcp.pop 128.0
    %v198 = vmul.f32 %v190, %v197
    %v199 = vmul.f32 %v192, %v197
    %v200 = vmul.f32 %v194, %v197
    %v201 = vmul.f32 %v196, %v197
    %v202 = vsub.f32 %v175, %v198
    %v203 = vsub.f32 %v178, %v199
    %v204 = vsub.f32 %v183, %v200
    %v205 = vsub.f32 %v186, %v201
    %v206 = vmul.f32 %v202, %v202
    %v207 = vmul.f32 %v203, %v203
    %v208 = vmul.f32 %v204, %v204
    %v209 = vmul.f32 %v205, %v205
    %210 = vadd.xlane.f32.xlu0 %v206
    %v211 = vpop.xlane.xlu0 %210
    %212 = vadd.xlane.f32.xlu0 %v207
    %v213 = vpop.xlane.xlu0 %212
    %214 = vadd.xlane.f32.xlu0 %v208
    %v215 = vpop.xlane.xlu0 %214
    %216 = vadd.xlane.f32.xlu0 %v209
    %v217 = vpop.xlane.xlu0 %216
    %v218 = vmul.f32 %v211, %v197
    %v219 = vmul.f32 %v213, %v197
    %v220 = vmul.f32 %v215, %v197
    %v221 = vmul.f32 %v217, %v197
    %v222 = vadd.f32 %v218, 1e-05
    %v223 = vadd.f32 %v219, 1e-05
    %v224 = vadd.f32 %v220, 1e-05
    %v225 = vadd.f32 %v221, 1e-05
    %v226 = vrsqrt.pop %v222
    %v227 = vrsqrt.pop %v223
    %v228 = vrsqrt.pop %v224
    %v229 = vrsqrt.pop %v225
    %v230 = vmul.f32 %v202, %v226
    %v231 = vmul.f32 %v203, %v227
    %v232 = vmul.f32 %v204, %v228
    %v233 = vmul.f32 %v205, %v229
    %v234 = vlaneseq
    %v235 = vshrl.u32 %v234, 7
    %v236 = vsub.s32 1, %v235
    %v237 = vrot.slane %v75, %v236
    %v238 = vmul.f32 %v230, %v237
    %v239 = vmul.f32 %v231, %v237
    %v240 = vmul.f32 %v232, %v237
    %v241 = vmul.f32 %v233, %v237
    %v242 = vlaneseq
    %v243 = vshrl.u32 %v242, 7
    %v244 = vsub.s32 2, %v243
    %v245 = vrot.slane %v75, %v244
    %v246 = vadd.f32 %v238, %v245
    %v247 = vadd.f32 %v239, %v245
    %v248 = vadd.f32 %v240, %v245
    %v249 = vadd.f32 %v241, %v245
    %v250 = vpack.c.bf16 %v247, %v246
    %v251 = vpack.c.bf16 %v249, %v248
    %v254 = vunpack.c.l.b16 %v250
    %v255 = vunpack.c.h.b16 %v250
    %v256 = vunpack.c.l.b16 %v251
    %v257 = vunpack.c.h.b16 %v251
    %v258 = vpack.c.b16 %v254, %v254
    %v259 = vpack.c.b16 %v255, %v255
    %v260 = vpack.c.b16 %v256, %v256
    %v261 = vpack.c.b16 %v257, %v257
    %266 = vst [vmem:[#allocation8] sm:$0xf] %v258
    %267 = vst [vmem:[#allocation8 + $0x4] sm:$0xf] %v259
    %268 = vst [vmem:[#allocation8 + $0x8] sm:$0xf] %v260
    %269 = vst [vmem:[#allocation8 + $0xc] sm:$0xf] %v261
    // Predicated region
    $region26: #{tpu_custom_call.1} parent=1 // pred_check
      _
    $region27: #{tpu_custom_call.1} parent=1 // pred_check_branch
      %271 = sbr.rel (0) target = $region29
    $region28: #{tpu_custom_call.1} parent=1 // pred_region
      %s273 = ssub.s32 256, 256
      %274 = vsyncadd [#allocation4], %s273
      %s275 = sshll.u32 [#allocation8], 4
      %s276 = int_to_ptr.vmem [resolvable:$true] %s275
      %281 = dma.vmem_to_hbm [thread:$0]  %s276, 256, %s3, [#allocation4], 64, 64, 4
    $region29: #{tpu_custom_call.1} parent=1 // pred_fallthru
      _
    // Predicated region
    $region30: #{tpu_custom_call.1} parent=1 // pred_check
      _
    $region31: #{tpu_custom_call.1} parent=1 // pred_check_branch
      %283 = sbr.rel (0) target = $region33
    $region32: #{tpu_custom_call.1} parent=1 // pred_region
      %284 = dma.done [#allocation4], 256
    $region33: #{tpu_custom_call.1} parent=1 // pred_fallthru
      _
    %285 = vsyncpa [#allocation3], 1
    %286 = vsyncpa [#allocation6], 1
    %287 = vsyncpa [#allocation4], 1

</llo_original>
